<compile_context>
chip_gen: v6e
topology: v6e:2x2x1
jax: 0.10.0
libtpu: 0.0.40
codegen_flags: <defaults>
</compile_context>

<pallas_src>
import jax
import jax.numpy as jnp
from jax.experimental import pallas as pl
from jax.experimental.pallas import tpu as pltpu

EPS = 1e-3  # matches nn.LayerNorm(hidden_size, eps=0.001)


def norm_gru_seq_kernel(x_ref, h0_ref, w_ref, avg_ref, prn_ref, pgn_ref,
                        gam_ref, bet_ref, o_ref, h_scr):
    t = pl.program_id(0)
    H = h0_ref.shape[1]

    @pl.when(t == 0)
    def _():
        h_scr[...] = h0_ref[...]

    x = x_ref[0]          # (B, I)  f32
    h = h_scr[...]        # (B, H)  f32, carried across grid steps

    # --- single fused MXU push: gates = [x | h] @ W_stack -> (B, 4H_pad) ---
    xh = jnp.concatenate([x, h], axis=-1)                       # (B, I+H)
    gates = jnp.dot(xh, w_ref[...], preferred_element_type=jnp.float32)

    avg = avg_ref[...]    # (NP, NP) block-diagonal 1/H averaging matrix
    gamma = gam_ref[...]  # (1, NP) = [g_r | g_u | 0 | g_n]
    beta = bet_ref[...]   # (1, NP) = [b_r | b_u | 0 | b_n]

    # --- phase 1: per-segment LayerNorm + sigmoid on the full 128-lane slab ---
    # segment layout of `gates`: [pre_r | pre_u | gi_n | gh_n]
    mu1 = jnp.dot(gates, avg, preferred_element_type=jnp.float32)
    c1 = gates - mu1
    var1 = jnp.dot(c1 * c1, avg, preferred_element_type=jnp.float32)
    y1 = c1 * jax.lax.rsqrt(var1 + EPS) * gamma + beta
    act = jax.nn.sigmoid(y1)          # reset in seg0, update in seg1 (rest unused)

    # --- phase 2: n-gate, still full width ---------------------------------
    # Move gi_n (seg2) and reset (seg0) onto the seg3 lanes with constant 0/1
    # selection matmuls (MXU has huge slack here); seg3 of `gates` is gh_n, so
    # seg3 of pre_n = gi_n + reset * gh_n. All other lanes are exactly 0.
    pre_n = (jnp.dot(gates, pgn_ref[...], preferred_element_type=jnp.float32)
             + jnp.dot(act, prn_ref[...], preferred_element_type=jnp.float32) * gates)
    mu2 = jnp.dot(pre_n, avg, preferred_element_type=jnp.float32)
    c2 = pre_n - mu2
    var2 = jnp.dot(c2 * c2, avg, preferred_element_type=jnp.float32)
    y2 = c2 * jax.lax.rsqrt(var2 + EPS) * gamma + beta
    nt = jnp.tanh(y2)                 # newval in seg3 (rest unused)

    # --- blend (module convention: h' = z*n + (1-z)*h) ----------------------
    update = act[:, 1 * H:2 * H]
    newval = nt[:, 3 * H:4 * H]
    h_new = update * newval + (1.0 - update) * h

    h_scr[...] = h_new
    o_ref[0] = h_new.astype(o_ref.dtype)


def pack_norm_gru_params(w_ih, w_hh, gamma, beta):
    """Pack torch-layout params for the fused, lane-dense kernel.

    w_ih: (3H, I)  nn.Linear(input_size, 3*hidden, bias=False).weight
    w_hh: (3H, H)  nn.Linear(hidden,     3*hidden, bias=False).weight
    gamma/beta: (3, H) LayerNorm affine params, rows = (reset, update, newval).
    """
    three_h, input_size = w_ih.shape
    H = three_h // 3
    NP = ((4 * H + 127) // 128) * 128  # lane-dense width

    wih_r, wih_u, wih_n = w_ih[:H].T, w_ih[H:2 * H].T, w_ih[2 * H:].T   # (I, H)
    whh_r, whh_u, whh_n = w_hh[:H].T, w_hh[H:2 * H].T, w_hh[2 * H:].T   # (H, H)

    w_stack = jnp.zeros((input_size + H, NP), jnp.float32)
    w_stack = w_stack.at[:input_size, 0 * H:1 * H].set(wih_r)
    w_stack = w_stack.at[:input_size, 1 * H:2 * H].set(wih_u)
    w_stack = w_stack.at[:input_size, 2 * H:3 * H].set(wih_n)
    w_stack = w_stack.at[input_size:, 0 * H:1 * H].set(whh_r)
    w_stack = w_stack.at[input_size:, 1 * H:2 * H].set(whh_u)
    w_stack = w_stack.at[input_size:, 3 * H:4 * H].set(whh_n)

    # Block-diagonal averaging matrix: each real HxH diagonal block = 1/H.
    idx = jnp.arange(NP)
    same_seg = (idx[:, None] // H) == (idx[None, :] // H)
    real = (idx[:, None] < 4 * H) & (idx[None, :] < 4 * H)
    a_avg = jnp.where(same_seg & real, 1.0 / H, 0.0).astype(jnp.float32)

    # Selection matrices: seg0 (reset) -> seg3 lanes, seg2 (gi_n) -> seg3 lanes.
    eye_h = jnp.eye(H, dtype=jnp.float32)
    p_rn = jnp.zeros((NP, NP), jnp.float32).at[0 * H:1 * H, 3 * H:4 * H].set(eye_h)
    p_gn = jnp.zeros((NP, NP), jnp.float32).at[2 * H:3 * H, 3 * H:4 * H].set(eye_h)

    gam = jnp.zeros((1, NP), jnp.float32)
    gam = gam.at[0, 0 * H:1 * H].set(gamma[0]).at[0, 1 * H:2 * H].set(gamma[1])
    gam = gam.at[0, 3 * H:4 * H].set(gamma[2])
    bet = jnp.zeros((1, NP), jnp.float32)
    bet = bet.at[0, 0 * H:1 * H].set(beta[0]).at[0, 1 * H:2 * H].set(beta[1])
    bet = bet.at[0, 3 * H:4 * H].set(beta[2])

    return dict(w_stack=w_stack, a_avg=a_avg, p_rn=p_rn, p_gn=p_gn,
                gam=gam, bet=bet)


def norm_gru_sequence(x_seq, h0, packed):
    """Apply NormGRUCell over a sequence; returns all hidden states (T, B, H)."""
    T, B, I = x_seq.shape
    H = h0.shape[1]
    NP = packed["w_stack"].shape[1]

    grid_spec = pltpu.PrefetchScalarGridSpec(
        num_scalar_prefetch=0,
        grid=(T,),
        in_specs=[
            pl.BlockSpec((1, B, I), lambda t: (t, 0, 0)),   # x_t streamed
            pl.BlockSpec((B, H), lambda t: (0, 0)),         # h0 (resident)
            pl.BlockSpec((I + H, NP), lambda t: (0, 0)),    # fused weights
            pl.BlockSpec((NP, NP), lambda t: (0, 0)),       # averaging matrix
            pl.BlockSpec((NP, NP), lambda t: (0, 0)),       # reset->seg3 select
            pl.BlockSpec((NP, NP), lambda t: (0, 0)),       # gi_n->seg3 select
            pl.BlockSpec((1, NP), lambda t: (0, 0)),        # packed gamma
            pl.BlockSpec((1, NP), lambda t: (0, 0)),        # packed beta
        ],
        out_specs=pl.BlockSpec((1, B, H), lambda t: (t, 0, 0)),
        scratch_shapes=[pltpu.VMEM((B, H), jnp.float32)],   # carried hidden state
    )
    return pl.pallas_call(
        norm_gru_seq_kernel,
        out_shape=jax.ShapeDtypeStruct((T, B, H), jnp.float32),
        grid_spec=grid_spec,
        compiler_params=pltpu.CompilerParams(
            dimension_semantics=("arbitrary",)),
    )(x_seq, h0, packed["w_stack"], packed["a_avg"], packed["p_rn"],
      packed["p_gn"], packed["gam"], packed["bet"])


def norm_gru_cell(x, h, packed):
    """Single cell step (== NormGRUCell.forward(x, h)): T=1 sequence."""
    return norm_gru_sequence(x[None], h, packed)[0]


# ------------------------- pure-JAX reference -------------------------------
def norm_gru_cell_ref(x, h, w_ih, w_hh, gamma, beta):
    def ln(v, g, b):
        mu = jnp.mean(v, axis=-1, keepdims=True)
        var = jnp.mean((v - mu) ** 2, axis=-1, keepdims=True)
        return (v - mu) / jnp.sqrt(var + EPS) * g + b

    H = h.shape[1]
    gi = x @ w_ih.T
    gh = h @ w_hh.T
    ri, ui, ni = gi[:, :H], gi[:, H:2 * H], gi[:, 2 * H:]
    rh, uh, nh = gh[:, :H], gh[:, H:2 * H], gh[:, 2 * H:]
    reset = jax.nn.sigmoid(ln(ri + rh, gamma[0], beta[0]))
    update = jax.nn.sigmoid(ln(ui + uh, gamma[1], beta[1]))
    newval = jnp.tanh(ln(ni + reset * nh, gamma[2], beta[2]))
    return update * newval + (1.0 - update) * h


def norm_gru_sequence_ref(x_seq, h0, w_ih, w_hh, gamma, beta):
    def step(h, x):
        h_new = norm_gru_cell_ref(x, h, w_ih, w_hh, gamma, beta)
        return h_new, h_new
    _, hs = jax.lax.scan(step, h0, x_seq)
    return hs


if __name__ == "__main__":
    input_size = 32
    hidden_size = 32
    batch = 8
    seq_len = 8

    key = jax.random.PRNGKey(0)
    kx, kh, kwi, kwh, kg, kb = jax.random.split(key, 6)

    x_seq = jax.random.normal(kx, (seq_len, batch, input_size), dtype=jnp.float32)
    h0 = jax.random.normal(kh, (batch, hidden_size), dtype=jnp.float32)

    bound_i = 1.0 / jnp.sqrt(input_size)
    bound_h = 1.0 / jnp.sqrt(hidden_size)
    w_ih = jax.random.uniform(kwi, (3 * hidden_size, input_size),
                              minval=-bound_i, maxval=bound_i, dtype=jnp.float32)
    w_hh = jax.random.uniform(kwh, (3 * hidden_size, hidden_size),
                              minval=-bound_h, maxval=bound_h, dtype=jnp.float32)
    gamma = 1.0 + 0.1 * jax.random.normal(kg, (3, hidden_size), dtype=jnp.float32)
    beta = 0.1 * jax.random.normal(kb, (3, hidden_size), dtype=jnp.float32)

    packed = pack_norm_gru_params(w_ih, w_hh, gamma, beta)  # one-time, off hot path

    # Time-looped kernel over the whole sequence (weights stay VMEM-resident).
    hs = norm_gru_sequence(x_seq, h0, packed)
    hs = jax.block_until_ready(hs)
    hs_ref = norm_gru_sequence_ref(x_seq, h0, w_ih, w_hh, gamma, beta)
    assert hs.shape == (seq_len, batch, hidden_size)
    assert jnp.all(jnp.isfinite(hs))
    assert jnp.allclose(hs, hs_ref, atol=1e-4, rtol=1e-4), "sequence mismatch vs reference"

    # Single-step parity with NormGRUCell.forward(x, h).
    h1 = jax.block_until_ready(norm_gru_cell(x_seq[0], h0, packed))
    h1_ref = norm_gru_cell_ref(x_seq[0], h0, w_ih, w_hh, gamma, beta)
    assert jnp.allclose(h1, h1_ref, atol=1e-4, rtol=1e-4), "cell-step mismatch vs reference"

    print("KERNEL_OK")
</pallas_src>

<mosaic_0001>
module attributes {stable_mosaic.version = 11 : i64} {
  func.func @norm_gru_seq_kernel(%arg0: i32, %arg1: memref<1x8x32xf32, #tpu.memory_space<vmem>>, %arg2: memref<8x32xf32, #tpu.memory_space<vmem>>, %arg3: memref<64x128xf32, #tpu.memory_space<vmem>>, %arg4: memref<128x128xf32, #tpu.memory_space<vmem>>, %arg5: memref<128x128xf32, #tpu.memory_space<vmem>>, %arg6: memref<128x128xf32, #tpu.memory_space<vmem>>, %arg7: memref<1x128xf32, #tpu.memory_space<vmem>>, %arg8: memref<1x128xf32, #tpu.memory_space<vmem>>, %arg9: memref<1x8x32xf32, #tpu.memory_space<vmem>>, %arg10: memref<8x32xf32, #tpu.memory_space<vmem>>) attributes {dimension_semantics = [#tpu.dimension_semantics<arbitrary>], iteration_bounds = array<i64: 8>, scalar_prefetch = 0 : i64, scratch_operands = 1 : i64, tpu.core_type = #tpu.core_type<tc>, window_params = [{transform_indices = @transform_0, window_bounds = array<i64: 1, 8, 32>}, {pipeline_mode = #tpu.pipeline_mode<synchronous>, transform_indices = @transform_1, window_bounds = array<i64: 8, 32>}, {pipeline_mode = #tpu.pipeline_mode<synchronous>, transform_indices = @transform_2, window_bounds = array<i64: 64, 128>}, {pipeline_mode = #tpu.pipeline_mode<synchronous>, transform_indices = @transform_3, window_bounds = array<i64: 128, 128>}, {pipeline_mode = #tpu.pipeline_mode<synchronous>, transform_indices = @transform_4, window_bounds = array<i64: 128, 128>}, {pipeline_mode = #tpu.pipeline_mode<synchronous>, transform_indices = @transform_5, window_bounds = array<i64: 128, 128>}, {pipeline_mode = #tpu.pipeline_mode<synchronous>, transform_indices = @transform_6, window_bounds = array<i64: 1, 128>}, {pipeline_mode = #tpu.pipeline_mode<synchronous>, transform_indices = @transform_7, window_bounds = array<i64: 1, 128>}, {transform_indices = @transform_8, window_bounds = array<i64: 1, 8, 32>}]} {
    %c0_i32 = arith.constant 0 : i32
    %0 = arith.cmpi eq, %arg0, %c0_i32 : i32
    %1 = arith.extui %0 : i1 to i32
    %c0_i32_0 = arith.constant 0 : i32
    %2 = arith.cmpi ne, %1, %c0_i32_0 : i32
    scf.if %2 {
      %c0_32 = arith.constant 0 : index
      %c0_33 = arith.constant 0 : index
      %59 = vector.load %arg2[%c0_32, %c0_33] : memref<8x32xf32, #tpu.memory_space<vmem>>, vector<8x32xf32>
      %c0_34 = arith.constant 0 : index
      %c0_35 = arith.constant 0 : index
      %60 = vector.load %arg10[%c0_34, %c0_35] : memref<8x32xf32, #tpu.memory_space<vmem>>, vector<8x32xf32>
      tpu.vector_store %arg10[%c0_34, %c0_35], %59 {strides = array<i32>} : memref<8x32xf32, #tpu.memory_space<vmem>>, vector<8x32xf32>,
    } else {
    }
    %c0 = arith.constant 0 : index
    %c0_1 = arith.constant 0 : index
    %c0_2 = arith.constant 0 : index
    %3 = vector.load %arg1[%c0, %c0_1, %c0_2] : memref<1x8x32xf32, #tpu.memory_space<vmem>>, vector<1x8x32xf32>
    %4 = vector.shape_cast %3 : vector<1x8x32xf32> to vector<8x32xf32>
    %c0_3 = arith.constant 0 : index
    %c0_4 = arith.constant 0 : index
    %5 = vector.load %arg10[%c0_3, %c0_4] : memref<8x32xf32, #tpu.memory_space<vmem>>, vector<8x32xf32>
    %6 = tpu.concatenate %4, %5 in 1 : vector<8x32xf32>, vector<8x32xf32> -> vector<8x64xf32>
    %c0_5 = arith.constant 0 : index
    %c0_6 = arith.constant 0 : index
    %7 = vector.load %arg3[%c0_5, %c0_6] : memref<64x128xf32, #tpu.memory_space<vmem>>, vector<64x128xf32>
    %cst = arith.constant dense<0.000000e+00> : vector<8x128xf32>
    %8 = tpu.matmul %6, %7, %cst {dimension_numbers = #tpu.dot_dimension_numbers<[1], [0], [0], [1], [0, 0, 1, 1], [], []>} : vector<8x64xf32>, vector<64x128xf32>, vector<8x128xf32> -> vector<8x128xf32>
    %c0_7 = arith.constant 0 : index
    %c0_8 = arith.constant 0 : index
    %9 = vector.load %arg4[%c0_7, %c0_8] : memref<128x128xf32, #tpu.memory_space<vmem>>, vector<128x128xf32>
    %c0_9 = arith.constant 0 : index
    %c0_10 = arith.constant 0 : index
    %10 = vector.load %arg7[%c0_9, %c0_10] : memref<1x128xf32, #tpu.memory_space<vmem>>, vector<1x128xf32>
    %c0_11 = arith.constant 0 : index
    %c0_12 = arith.constant 0 : index
    %11 = vector.load %arg8[%c0_11, %c0_12] : memref<1x128xf32, #tpu.memory_space<vmem>>, vector<1x128xf32>
    %cst_13 = arith.constant dense<0.000000e+00> : vector<8x128xf32>
    %12 = tpu.matmul %8, %9, %cst_13 {dimension_numbers = #tpu.dot_dimension_numbers<[1], [0], [0], [1], [0, 0, 1, 1], [], []>} : vector<8x128xf32>, vector<128x128xf32>, vector<8x128xf32> -> vector<8x128xf32>
    %13 = arith.subf %8, %12 : vector<8x128xf32>
    %14 = arith.mulf %13, %13 : vector<8x128xf32>
    %cst_14 = arith.constant dense<0.000000e+00> : vector<8x128xf32>
    %15 = tpu.matmul %14, %9, %cst_14 {dimension_numbers = #tpu.dot_dimension_numbers<[1], [0], [0], [1], [0, 0, 1, 1], [], []>} : vector<8x128xf32>, vector<128x128xf32>, vector<8x128xf32> -> vector<8x128xf32>
    %cst_15 = arith.constant 1.000000e-03 : f32
    %16 = vector.broadcast %cst_15 : f32 to vector<8x128xf32>
    %17 = arith.addf %15, %16 : vector<8x128xf32>
    %18 = math.rsqrt %17 : vector<8x128xf32>
    %19 = arith.mulf %13, %18 : vector<8x128xf32>
    %20 = vector.broadcast %10 : vector<1x128xf32> to vector<8x128xf32>
    %21 = arith.mulf %19, %20 : vector<8x128xf32>
    %22 = vector.broadcast %11 : vector<1x128xf32> to vector<8x128xf32>
    %23 = arith.addf %21, %22 : vector<8x128xf32>
    %24 = arith.negf %23 : vector<8x128xf32>
    %25 = math.exp %24 : vector<8x128xf32>
    %cst_16 = arith.constant 1.000000e+00 : f32
    %26 = vector.broadcast %cst_16 : f32 to vector<8x128xf32>
    %27 = arith.addf %26, %25 : vector<8x128xf32>
    %28 = arith.divf %26, %27 : vector<8x128xf32>
    %c0_17 = arith.constant 0 : index
    %c0_18 = arith.constant 0 : index
    %29 = vector.load %arg6[%c0_17, %c0_18] : memref<128x128xf32, #tpu.memory_space<vmem>>, vector<128x128xf32>
    %cst_19 = arith.constant dense<0.000000e+00> : vector<8x128xf32>
    %30 = tpu.matmul %8, %29, %cst_19 {dimension_numbers = #tpu.dot_dimension_numbers<[1], [0], [0], [1], [0, 0, 1, 1], [], []>} : vector<8x128xf32>, vector<128x128xf32>, vector<8x128xf32> -> vector<8x128xf32>
    %c0_20 = arith.constant 0 : index
    %c0_21 = arith.constant 0 : index
    %31 = vector.load %arg5[%c0_20, %c0_21] : memref<128x128xf32, #tpu.memory_space<vmem>>, vector<128x128xf32>
    %cst_22 = arith.constant dense<0.000000e+00> : vector<8x128xf32>
    %32 = tpu.matmul %28, %31, %cst_22 {dimension_numbers = #tpu.dot_dimension_numbers<[1], [0], [0], [1], [0, 0, 1, 1], [], []>} : vector<8x128xf32>, vector<128x128xf32>, vector<8x128xf32> -> vector<8x128xf32>
    %33 = arith.mulf %32, %8 : vector<8x128xf32>
    %34 = arith.addf %30, %33 : vector<8x128xf32>
    %cst_23 = arith.constant dense<0.000000e+00> : vector<8x128xf32>
    %35 = tpu.matmul %34, %9, %cst_23 {dimension_numbers = #tpu.dot_dimension_numbers<[1], [0], [0], [1], [0, 0, 1, 1], [], []>} : vector<8x128xf32>, vector<128x128xf32>, vector<8x128xf32> -> vector<8x128xf32>
    %36 = arith.subf %34, %35 : vector<8x128xf32>
    %37 = arith.mulf %36, %36 : vector<8x128xf32>
    %cst_24 = arith.constant dense<0.000000e+00> : vector<8x128xf32>
    %38 = tpu.matmul %37, %9, %cst_24 {dimension_numbers = #tpu.dot_dimension_numbers<[1], [0], [0], [1], [0, 0, 1, 1], [], []>} : vector<8x128xf32>, vector<128x128xf32>, vector<8x128xf32> -> vector<8x128xf32>
    %cst_25 = arith.constant 1.000000e-03 : f32
    %39 = vector.broadcast %cst_25 : f32 to vector<8x128xf32>
    %40 = arith.addf %38, %39 : vector<8x128xf32>
    %41 = math.rsqrt %40 : vector<8x128xf32>
    %42 = arith.mulf %36, %41 : vector<8x128xf32>
    %43 = vector.broadcast %10 : vector<1x128xf32> to vector<8x128xf32>
    %44 = arith.mulf %42, %43 : vector<8x128xf32>
    %45 = vector.broadcast %11 : vector<1x128xf32> to vector<8x128xf32>
    %46 = arith.addf %44, %45 : vector<8x128xf32>
    %47 = math.tanh %46 : vector<8x128xf32>
    %48 = vector.extract_strided_slice %28 {offsets = [0, 32], sizes = [8, 32], strides = [1, 1]} : vector<8x128xf32> to vector<8x32xf32>
    %49 = vector.extract_strided_slice %47 {offsets = [0, 96], sizes = [8, 32], strides = [1, 1]} : vector<8x128xf32> to vector<8x32xf32>
    %50 = arith.mulf %48, %49 : vector<8x32xf32>
    %cst_26 = arith.constant 1.000000e+00 : f32
    %51 = vector.broadcast %cst_26 : f32 to vector<8x32xf32>
    %52 = arith.subf %51, %48 : vector<8x32xf32>
    %53 = arith.mulf %52, %5 : vector<8x32xf32>
    %54 = arith.addf %50, %53 : vector<8x32xf32>
    %c0_27 = arith.constant 0 : index
    %c0_28 = arith.constant 0 : index
    %55 = vector.load %arg10[%c0_27, %c0_28] : memref<8x32xf32, #tpu.memory_space<vmem>>, vector<8x32xf32>
    tpu.vector_store %arg10[%c0_27, %c0_28], %54 {strides = array<i32>} : memref<8x32xf32, #tpu.memory_space<vmem>>, vector<8x32xf32>,
    %c0_29 = arith.constant 0 : index
    %c0_30 = arith.constant 0 : index
    %c0_31 = arith.constant 0 : index
    %56 = vector.load %arg9[%c0_29, %c0_30, %c0_31] : memref<1x8x32xf32, #tpu.memory_space<vmem>>, vector<1x8x32xf32>
    %57 = vector.shape_cast %56 : vector<1x8x32xf32> to vector<8x32xf32>
    %58 = vector.shape_cast %54 : vector<8x32xf32> to vector<1x8x32xf32>
    tpu.vector_store %arg9[%c0_29, %c0_30, %c0_31], %58 {strides = array<i32>} : memref<1x8x32xf32, #tpu.memory_space<vmem>>, vector<1x8x32xf32>,
    return
  }
  func.func @transform_0(%arg0: i32) -> (i32, i32, i32) {
    %c0_i32 = arith.constant 0 : i32
    %c0_i32_0 = arith.constant 0 : i32
    %c0_i32_1 = arith.constant 0 : i32
    return %arg0, %c0_i32, %c0_i32_0 : i32, i32, i32
  }
  func.func @transform_1(%arg0: i32) -> (i32, i32) {
    %c0_i32 = arith.constant 0 : i32
    %c0_i32_0 = arith.constant 0 : i32
    %c0_i32_1 = arith.constant 0 : i32
    return %c0_i32, %c0_i32_0 : i32, i32
  }
  func.func @transform_2(%arg0: i32) -> (i32, i32) {
    %c0_i32 = arith.constant 0 : i32
    %c0_i32_0 = arith.constant 0 : i32
    %c0_i32_1 = arith.constant 0 : i32
    return %c0_i32, %c0_i32_0 : i32, i32
  }
  func.func @transform_3(%arg0: i32) -> (i32, i32) {
    %c0_i32 = arith.constant 0 : i32
    %c0_i32_0 = arith.constant 0 : i32
    %c0_i32_1 = arith.constant 0 : i32
    return %c0_i32, %c0_i32_0 : i32, i32
  }
  func.func @transform_4(%arg0: i32) -> (i32, i32) {
    %c0_i32 = arith.constant 0 : i32
    %c0_i32_0 = arith.constant 0 : i32
    %c0_i32_1 = arith.constant 0 : i32
    return %c0_i32, %c0_i32_0 : i32, i32
  }
  func.func @transform_5(%arg0: i32) -> (i32, i32) {
    %c0_i32 = arith.constant 0 : i32
    %c0_i32_0 = arith.constant 0 : i32
    %c0_i32_1 = arith.constant 0 : i32
    return %c0_i32, %c0_i32_0 : i32, i32
  }
  func.func @transform_6(%arg0: i32) -> (i32, i32) {
    %c0_i32 = arith.constant 0 : i32
    %c0_i32_0 = arith.constant 0 : i32
    %c0_i32_1 = arith.constant 0 : i32
    return %c0_i32, %c0_i32_0 : i32, i32
  }
  func.func @transform_7(%arg0: i32) -> (i32, i32) {
    %c0_i32 = arith.constant 0 : i32
    %c0_i32_0 = arith.constant 0 : i32
    %c0_i32_1 = arith.constant 0 : i32
    return %c0_i32, %c0_i32_0 : i32, i32
  }
  func.func @transform_8(%arg0: i32) -> (i32, i32, i32) {
    %c0_i32 = arith.constant 0 : i32
    %c0_i32_0 = arith.constant 0 : i32
    %c0_i32_1 = arith.constant 0 : i32
    return %arg0, %c0_i32, %c0_i32_0 : i32, i32, i32
  }
}

</mosaic_0001>

<llo_original>
// kernel: tpu_custom_call.1
$region0: #{tpu_custom_call.1}
  #allocation0 [shape = 'u32[]', space=smem, size = 0x4, offset = 0x4, fixed_abs, tag = 'smem constant byte address 0x4 - core index']
  #allocation1 [shape = 'u32[144,128]{1,0:T(1,128)}', space=vmem, size = 0x12000, scoped, tag = 'internal scratch']
  #allocation2 [shape = 'f32[8,32]{1,0:T(8,128)}', space=vmem, size = 0x1000, scoped, tag = 'scratch operand']
  %s0 = inlined_call_operand.hbm [shape: f32[8,8,32], index: 0, kind: input, shape index: {}]
  %s1 = inlined_call_operand.hbm [shape: f32[8,32], index: 1, kind: input, shape index: {}]
  %s2 = inlined_call_operand.hbm [shape: f32[64,128], index: 2, kind: input, shape index: {}]
  %s3 = inlined_call_operand.hbm [shape: f32[128,128], index: 3, kind: input, shape index: {}]
  %s4 = inlined_call_operand.hbm [shape: f32[128,128], index: 4, kind: input, shape index: {}]
  %s5 = inlined_call_operand.hbm [shape: f32[128,128], index: 5, kind: input, shape index: {}]
  %s6 = inlined_call_operand.vmem [shape: f32[1,128], index: 6, kind: input, shape index: {}]
  %s7 = inlined_call_operand.vmem [shape: f32[1,128], index: 7, kind: input, shape index: {}]
  %s8 = inlined_call_operand.hbm [shape: f32[8,8,32], index: 8, kind: output, shape index: {}]
  %s9 = sld [smem:[#allocation0]]
  $region93: #{tpu_custom_call.1} parent=0
    _
  %s11 = ssub.s32 1, %s9
  %s12 = scalar_select 0, %s11, %s9
  $region1: #{tpu_custom_call.1} parent=0
    #allocation3 [shape = 'u8[8192]{0}', space=vmem, size = 0x2000, scoped, tag = 'input window, operand 0']
    #allocation4 [shape = 's32[2]{0}', space=sflag, size = 0x8, scoped, tag = 'scoped memory for tpu_custom_call.1']
    #allocation5 [shape = 's32[2]{0}', space=sflag, size = 0x8, scoped, tag = 'scoped memory for tpu_custom_call.1']
    #allocation6 [shape = 'u8[4096]{0}', space=vmem, size = 0x1000, scoped, tag = 'input window, operand 1, single buffered']
    #allocation7 [shape = 's32[1]{0}', space=sflag, size = 0x4, scoped, tag = 'scoped memory for tpu_custom_call.1']
    #allocation8 [shape = 'u8[32768]{0}', space=vmem, size = 0x8000, scoped, tag = 'input window, operand 2, single buffered']
    #allocation9 [shape = 'u8[65536]{0}', space=vmem, size = 0x10000, scoped, tag = 'input window, operand 3, single buffered']
    #allocation10 [shape = 's32[1]{0}', space=sflag, size = 0x4, scoped, tag = 'scoped memory for tpu_custom_call.1']
    #allocation11 [shape = 'u8[65536]{0}', space=vmem, size = 0x10000, scoped, tag = 'input window, operand 4, single buffered']
    #allocation12 [shape = 'u8[65536]{0}', space=vmem, size = 0x10000, scoped, tag = 'input window, operand 5, single buffered']
    #allocation13 [shape = 's32[1]{0}', space=sflag, size = 0x4, scoped, tag = 'scoped memory for tpu_custom_call.1']
    #allocation14 [shape = 'u8[8192]{0}', space=vmem, size = 0x2000, scoped, tag = 'output window, operand 0']
    %13 = vsyncpa [#allocation4], 0
    %s14 = scalar_lea.sflag [#allocation4], 1
    %15 = vsyncpa %s14, 0
    %16 = vsyncpa [#allocation7], 0
    %17 = vsyncpa [#allocation10], 0
    %18 = vsyncpa [#allocation13], 0
    %19 = vsyncpa [#allocation5], 0
    %s20 = scalar_lea.sflag [#allocation5], 1
    %21 = vsyncpa %s20, 0
    loop: start=0, step=1, limit=10
    $region2: #{tpu_custom_call.1} parent=1 // loop_pre_header
      _
    $region3: #{tpu_custom_call.1} parent=1 // loop_header
      %s23 = sphi 0, %s27
      %p24 = scmp.ge.s32.totalorder %s23, 10
      %s33 = sphi 0, %s35
      %s36 = sphi 0, %s33
      %s37 = sphi 0, %s36
      %s53 = sphi 0, %s37
      %s57 = sphi 0, %s57
      %s59 = sphi 0, %s57
      %s60 = sphi 0, %s59
      %s74 = sphi 0, %s60
      %s78 = sphi 0, %s78
      %s80 = sphi 0, %s78
      %s81 = sphi 0, %s80
      %s95 = sphi 0, %s81
      %s99 = sphi 0, %s99
      %s101 = sphi 0, %s99
      %s102 = sphi 0, %s101
      %s116 = sphi 0, %s102
      %s120 = sphi 0, %s120
      %s122 = sphi 0, %s120
      %s123 = sphi 0, %s122
      %s137 = sphi 0, %s123
      %s141 = sphi 0, %s141
      %s143 = sphi 0, %s141
      %s144 = sphi 0, %s143
      %s158 = sphi 0, %s144
      %s162 = sphi 0, %s162
      %s164 = sphi 0, %s162
      %s165 = sphi 0, %s164
      %s179 = sphi 0, %s165
      %s183 = sphi 0, %s183
      %s185 = sphi 0, %s183
      %s186 = sphi 0, %s185
      %s200 = sphi 0, %s186
      %s206 = sphi 0, %s208
      %s209 = sphi 0, %s206
      %s210 = sphi 0, %s209
      %s226 = sphi 0, %s210
    $region4: #{tpu_custom_call.1} parent=1 // loop_header_branch
      %26 = sbr.rel (%p24) target = $region8
    $region5: #{tpu_custom_call.1} parent=1 // loop_body
      %s28 = ssub.s32 %s23, 1
      %s29 = ssub.s32 %s23, 2
      %s30 = sadd.s32 %s23, 1
      %s31 = ssub.s32 %s23, %s30
      %p32 = scmp.eq.s32.totalorder %s31, 0
      %s34 = sadd.s32 %s33, 1
      %s35 = scalar_select %p32, %s33, %s34
      %p38 = pneg %p32
      %p39 = scmp.eq.s32.totalorder %s23, 7
      %p40 = por %p38, %p39
      %p41 = scmp.ne.s32.totalorder %s33, %s36
      %p42 = scmp.eq.s32.totalorder %s23, 0
      %p43 = por %p41, %p42
      %p44 = scmp.ne.s32.totalorder %s33, %s36
      %p45 = scmp.eq.s32.totalorder %s28, 7
      %p46 = por %p44, %p45
      %p47 = scmp.ne.s32.totalorder %s36, %s37
      %p48 = scmp.eq.s32.totalorder %s28, 0
      %p49 = por %p47, %p48
      %p50 = scmp.ne.s32.totalorder %s36, %s37
      %p51 = scmp.eq.s32.totalorder %s29, 7
      %p52 = por %p50, %p51
      %p54 = scmp.ne.s32.totalorder %s37, %s53
      %p55 = scmp.eq.s32.totalorder %s29, 0
      %p56 = por %p54, %p55
      %s58 = sadd.s32 %s57, 1
      %p61 = scmp.eq.s32.totalorder %s23, 7
      %p62 = scmp.ne.s32.totalorder %s57, %s59
      %p63 = scmp.eq.s32.totalorder %s23, 0
      %p64 = por %p62, %p63
      %p65 = scmp.ne.s32.totalorder %s57, %s59
      %p66 = scmp.eq.s32.totalorder %s28, 7
      %p67 = por %p65, %p66
      %p68 = scmp.ne.s32.totalorder %s59, %s60
      %p69 = scmp.eq.s32.totalorder %s28, 0
      %p70 = por %p68, %p69
      %p71 = scmp.ne.s32.totalorder %s59, %s60
      %p72 = scmp.eq.s32.totalorder %s29, 7
      %p73 = por %p71, %p72
      %p75 = scmp.ne.s32.totalorder %s60, %s74
      %p76 = scmp.eq.s32.totalorder %s29, 0
      %p77 = por %p75, %p76
      %s79 = sadd.s32 %s78, 1
      %p82 = scmp.eq.s32.totalorder %s23, 7
      %p83 = scmp.ne.s32.totalorder %s78, %s80
      %p84 = scmp.eq.s32.totalorder %s23, 0
      %p85 = por %p83, %p84
      %p86 = scmp.ne.s32.totalorder %s78, %s80
      %p87 = scmp.eq.s32.totalorder %s28, 7
      %p88 = por %p86, %p87
      %p89 = scmp.ne.s32.totalorder %s80, %s81
      %p90 = scmp.eq.s32.totalorder %s28, 0
      %p91 = por %p89, %p90
      %p92 = scmp.ne.s32.totalorder %s80, %s81
      %p93 = scmp.eq.s32.totalorder %s29, 7
      %p94 = por %p92, %p93
      %p96 = scmp.ne.s32.totalorder %s81, %s95
      %p97 = scmp.eq.s32.totalorder %s29, 0
      %p98 = por %p96, %p97
      %s100 = sadd.s32 %s99, 1
      %p103 = scmp.eq.s32.totalorder %s23, 7
      %p104 = scmp.ne.s32.totalorder %s99, %s101
      %p105 = scmp.eq.s32.totalorder %s23, 0
      %p106 = por %p104, %p105
      %p107 = scmp.ne.s32.totalorder %s99, %s101
      %p108 = scmp.eq.s32.totalorder %s28, 7
      %p109 = por %p107, %p108
      %p110 = scmp.ne.s32.totalorder %s101, %s102
      %p111 = scmp.eq.s32.totalorder %s28, 0
      %p112 = por %p110, %p111
      %p113 = scmp.ne.s32.totalorder %s101, %s102
      %p114 = scmp.eq.s32.totalorder %s29, 7
      %p115 = por %p113, %p114
      %p117 = scmp.ne.s32.totalorder %s102, %s116
      %p118 = scmp.eq.s32.totalorder %s29, 0
      %p119 = por %p117, %p118
      %s121 = sadd.s32 %s120, 1
      %p124 = scmp.eq.s32.totalorder %s23, 7
      %p125 = scmp.ne.s32.totalorder %s120, %s122
      %p126 = scmp.eq.s32.totalorder %s23, 0
      %p127 = por %p125, %p126
      %p128 = scmp.ne.s32.totalorder %s120, %s122
      %p129 = scmp.eq.s32.totalorder %s28, 7
      %p130 = por %p128, %p129
      %p131 = scmp.ne.s32.totalorder %s122, %s123
      %p132 = scmp.eq.s32.totalorder %s28, 0
      %p133 = por %p131, %p132
      %p134 = scmp.ne.s32.totalorder %s122, %s123
      %p135 = scmp.eq.s32.totalorder %s29, 7
      %p136 = por %p134, %p135
      %p138 = scmp.ne.s32.totalorder %s123, %s137
      %p139 = scmp.eq.s32.totalorder %s29, 0
      %p140 = por %p138, %p139
      %s142 = sadd.s32 %s141, 1
      %p145 = scmp.eq.s32.totalorder %s23, 7
      %p146 = scmp.ne.s32.totalorder %s141, %s143
      %p147 = scmp.eq.s32.totalorder %s23, 0
      %p148 = por %p146, %p147
      %p149 = scmp.ne.s32.totalorder %s141, %s143
      %p150 = scmp.eq.s32.totalorder %s28, 7
      %p151 = por %p149, %p150
      %p152 = scmp.ne.s32.totalorder %s143, %s144
      %p153 = scmp.eq.s32.totalorder %s28, 0
      %p154 = por %p152, %p153
      %p155 = scmp.ne.s32.totalorder %s143, %s144
      %p156 = scmp.eq.s32.totalorder %s29, 7
      %p157 = por %p155, %p156
      %p159 = scmp.ne.s32.totalorder %s144, %s158
      %p160 = scmp.eq.s32.totalorder %s29, 0
      %p161 = por %p159, %p160
      %s163 = sadd.s32 %s162, 1
      %p166 = scmp.eq.s32.totalorder %s23, 7
      %p167 = scmp.ne.s32.totalorder %s162, %s164
      %p168 = scmp.eq.s32.totalorder %s23, 0
      %p169 = por %p167, %p168
      %p170 = scmp.ne.s32.totalorder %s162, %s164
      %p171 = scmp.eq.s32.totalorder %s28, 7
      %p172 = por %p170, %p171
      %p173 = scmp.ne.s32.totalorder %s164, %s165
      %p174 = scmp.eq.s32.totalorder %s28, 0
      %p175 = por %p173, %p174
      %p176 = scmp.ne.s32.totalorder %s164, %s165
      %p177 = scmp.eq.s32.totalorder %s29, 7
      %p178 = por %p176, %p177
      %p180 = scmp.ne.s32.totalorder %s165, %s179
      %p181 = scmp.eq.s32.totalorder %s29, 0
      %p182 = por %p180, %p181
      %s184 = sadd.s32 %s183, 1
      %p187 = scmp.eq.s32.totalorder %s23, 7
      %p188 = scmp.ne.s32.totalorder %s183, %s185
      %p189 = scmp.eq.s32.totalorder %s23, 0
      %p190 = por %p188, %p189
      %p191 = scmp.ne.s32.totalorder %s183, %s185
      %p192 = scmp.eq.s32.totalorder %s28, 7
      %p193 = por %p191, %p192
      %p194 = scmp.ne.s32.totalorder %s185, %s186
      %p195 = scmp.eq.s32.totalorder %s28, 0
      %p196 = por %p194, %p195
      %p197 = scmp.ne.s32.totalorder %s185, %s186
      %p198 = scmp.eq.s32.totalorder %s29, 7
      %p199 = por %p197, %p198
      %p201 = scmp.ne.s32.totalorder %s186, %s200
      %p202 = scmp.eq.s32.totalorder %s29, 0
      %p203 = por %p201, %p202
      %s204 = ssub.s32 %s23, %s30
      %p205 = scmp.eq.s32.totalorder %s204, 0
      %s207 = sadd.s32 %s206, 1
      %s208 = scalar_select %p205, %s206, %s207
      %p211 = pneg %p205
      %p212 = scmp.eq.s32.totalorder %s23, 7
      %p213 = por %p211, %p212
      %p214 = scmp.ne.s32.totalorder %s206, %s209
      %p215 = scmp.eq.s32.totalorder %s23, 0
      %p216 = por %p214, %p215
      %p217 = scmp.ne.s32.totalorder %s206, %s209
      %p218 = scmp.eq.s32.totalorder %s28, 7
      %p219 = por %p217, %p218
      %p220 = scmp.ne.s32.totalorder %s209, %s210
      %p221 = scmp.eq.s32.totalorder %s28, 0
      %p222 = por %p220, %p221
      %p223 = scmp.ne.s32.totalorder %s209, %s210
      %p224 = scmp.eq.s32.totalorder %s29, 7
      %p225 = por %p223, %p224
      %p227 = scmp.ne.s32.totalorder %s210, %s226
      %p228 = scmp.eq.s32.totalorder %s29, 0
      %p229 = por %p227, %p228
      %p230 = scmp.le.s32.totalorder 1, %s23
      %p231 = scmp.lt.s32.totalorder %s23, 9
      %p232 = pnand %p230, %p231
      %p233 = pneg %p232
      // Predicated region
      $region9: #{tpu_custom_call.1} parent=5 // pred_check
        _
      $region10: #{tpu_custom_call.1} parent=5 // pred_check_branch
        %235 = sbr.rel (%p232) target = $region12
      $region11: #{tpu_custom_call.1} parent=5 // pred_region
        %s236 = ssub.s32 %s23, 1
        // Predicated region
        $region13: #{tpu_custom_call.1} parent=11 // pred_check
          %p237 = pneg %p70
        $region14: #{tpu_custom_call.1} parent=11 // pred_check_branch
          %239 = sbr.rel (%p237) target = $region16
        $region15: #{tpu_custom_call.1} parent=11 // pred_region
          %s241 = ssub.s32 128, 128
          %242 = vsyncadd [#allocation7], %s241
          %s244 = sshll.u32 [#allocation6], 4
          %s245 = int_to_ptr.vmem [resolvable:$true] %s244
          %247 = dma.hbm_to_vmem [thread:$0]  %s1, 128, %s245, [#allocation7]
        $region16: #{tpu_custom_call.1} parent=11 // pred_fallthru
          _
        // Predicated region
        $region17: #{tpu_custom_call.1} parent=11 // pred_check
          %p248 = pneg %p91
        $region18: #{tpu_custom_call.1} parent=11 // pred_check_branch
          %250 = sbr.rel (%p248) target = $region20
        $region19: #{tpu_custom_call.1} parent=11 // pred_region
          %s252 = ssub.s32 1024, 1024
          %253 = vsyncadd [#allocation7], %s252
          %s254 = sshll.u32 [#allocation8], 4
          %s255 = int_to_ptr.vmem [resolvable:$true] %s254
          %260 = dma.hbm_to_vmem [thread:$0]  %s2, 1024, %s255, [#allocation7], 128, 128, 8
        $region20: #{tpu_custom_call.1} parent=11 // pred_fallthru
          _
        // Predicated region
        $region21: #{tpu_custom_call.1} parent=11 // pred_check
          %p261 = pneg %p112
        $region22: #{tpu_custom_call.1} parent=11 // pred_check_branch
          %263 = sbr.rel (%p261) target = $region24
        $region23: #{tpu_custom_call.1} parent=11 // pred_region
          %s265 = ssub.s32 2048, 2048
          %266 = vsyncadd [#allocation10], %s265
          %s267 = sshll.u32 [#allocation9], 4
          %s268 = int_to_ptr.vmem [resolvable:$true] %s267
          %273 = dma.hbm_to_vmem [thread:$0]  %s3, 2048, %s268, [#allocation10], 128, 128, 8
        $region24: #{tpu_custom_call.1} parent=11 // pred_fallthru
          _
        // Predicated region
        $region25: #{tpu_custom_call.1} parent=11 // pred_check
          %p274 = pneg %p133
        $region26: #{tpu_custom_call.1} parent=11 // pred_check_branch
          %276 = sbr.rel (%p274) target = $region28
        $region27: #{tpu_custom_call.1} parent=11 // pred_region
          %s278 = ssub.s32 2048, 2048
          %279 = vsyncadd [#allocation10], %s278
          %s280 = sshll.u32 [#allocation11], 4
          %s281 = int_to_ptr.vmem [resolvable:$true] %s280
          %286 = dma.hbm_to_vmem [thread:$0]  %s4, 2048, %s281, [#allocation10], 128, 128, 8
        $region28: #{tpu_custom_call.1} parent=11 // pred_fallthru
          _
        // Predicated region
        $region29: #{tpu_custom_call.1} parent=11 // pred_check
          %p287 = pneg %p154
        $region30: #{tpu_custom_call.1} parent=11 // pred_check_branch
          %289 = sbr.rel (%p287) target = $region32
        $region31: #{tpu_custom_call.1} parent=11 // pred_region
          %s291 = ssub.s32 2048, 2048
          %292 = vsyncadd [#allocation13], %s291
          %s293 = sshll.u32 [#allocation12], 4
          %s294 = int_to_ptr.vmem [resolvable:$true] %s293
          %299 = dma.hbm_to_vmem [thread:$0]  %s5, 2048, %s294, [#allocation13], 128, 128, 8
        $region32: #{tpu_custom_call.1} parent=11 // pred_fallthru
          _
        // Predicated region
        $region33: #{tpu_custom_call.1} parent=11 // pred_check
          %p300 = pneg %p175
        $region34: #{tpu_custom_call.1} parent=11 // pred_check_branch
          %302 = sbr.rel (%p300) target = $region36
        $region35: #{tpu_custom_call.1} parent=11 // pred_region
          _
        $region36: #{tpu_custom_call.1} parent=11 // pred_fallthru
          _
        // Predicated region
        $region37: #{tpu_custom_call.1} parent=11 // pred_check
          %p303 = pneg %p196
        $region38: #{tpu_custom_call.1} parent=11 // pred_check_branch
          %305 = sbr.rel (%p303) target = $region40
        $region39: #{tpu_custom_call.1} parent=11 // pred_region
          _
        $region40: #{tpu_custom_call.1} parent=11 // pred_fallthru
          _
      $region12: #{tpu_custom_call.1} parent=5 // pred_fallthru
        _
      %p306 = scmp.lt.s32.totalorder %s23, 8
      // Predicated region
      $region41: #{tpu_custom_call.1} parent=5 // pred_check
        %p307 = pneg %p306
      $region42: #{tpu_custom_call.1} parent=5 // pred_check_branch
        %309 = sbr.rel (%p307) target = $region44
      $region43: #{tpu_custom_call.1} parent=5 // pred_region
        // Predicated region
        $region45: #{tpu_custom_call.1} parent=43 // pred_check
          %p310 = pneg %p43
        $region46: #{tpu_custom_call.1} parent=43 // pred_check_branch
          %312 = sbr.rel (%p310) target = $region48
        $region47: #{tpu_custom_call.1} parent=43 // pred_region
          %s313 = sand.u32 %s33, 1
          %s314 = scalar_lea.sflag [#allocation4], %s313
          %s315 = sand.u32 %s33, 1
          %s316 = smul.addr %s315, 8
          %s317 = scalar_lea.vmem [#allocation3], %s316
          %s319 = ssub.s32 128, 128
          %320 = vsyncadd %s314, %s319
          %s321 = smul.addr %s23, 128
          %s322 = scalar_lea.hbm %s0, %s321
          %s324 = sshll.u32 %s317, 4
          %s325 = int_to_ptr.vmem [resolvable:$true] %s324
          %327 = dma.hbm_to_vmem [thread:$0]  %s322, 128, %s325, %s314
        $region48: #{tpu_custom_call.1} parent=43 // pred_fallthru
          _
      $region44: #{tpu_custom_call.1} parent=5 // pred_fallthru
        _
      %p328 = scmp.le.s32.totalorder 1, %s23
      %p329 = scmp.lt.s32.totalorder %s23, 9
      %p330 = pnand %p328, %p329
      %p331 = pneg %p330
      // Predicated region
      $region49: #{tpu_custom_call.1} parent=5 // pred_check
        _
      $region50: #{tpu_custom_call.1} parent=5 // pred_check_branch
        %333 = sbr.rel (%p330) target = $region52
      $region51: #{tpu_custom_call.1} parent=5 // pred_region
        %s334 = ssub.s32 %s23, 1
        %s335 = sand.u32 %s36, 1
        %s336 = scalar_lea.sflag [#allocation4], %s335
        %s337 = sand.u32 %s36, 1
        %s338 = smul.addr %s337, 8
        %s339 = scalar_lea.vmem [#allocation3], %s338
        // Predicated region
        $region53: #{tpu_custom_call.1} parent=51 // pred_check
          %p340 = pneg %p49
        $region54: #{tpu_custom_call.1} parent=51 // pred_check_branch
          %342 = sbr.rel (%p340) target = $region56
        $region55: #{tpu_custom_call.1} parent=51 // pred_region
          %343 = dma.done %s336, 128
        $region56: #{tpu_custom_call.1} parent=51 // pred_fallthru
          _
        // Predicated region
        $region57: #{tpu_custom_call.1} parent=51 // pred_check
          %p344 = pneg %p70
        $region58: #{tpu_custom_call.1} parent=51 // pred_check_branch
          %346 = sbr.rel (%p344) target = $region60
        $region59: #{tpu_custom_call.1} parent=51 // pred_region
          %347 = dma.done [#allocation7], 128
        $region60: #{tpu_custom_call.1} parent=51 // pred_fallthru
          _
        // Predicated region
        $region61: #{tpu_custom_call.1} parent=51 // pred_check
          %p348 = pneg %p91
        $region62: #{tpu_custom_call.1} parent=51 // pred_check_branch
          %350 = sbr.rel (%p348) target = $region64
        $region63: #{tpu_custom_call.1} parent=51 // pred_region
          %351 = dma.done [#allocation7], 1024
        $region64: #{tpu_custom_call.1} parent=51 // pred_fallthru
          _
        // Predicated region
        $region65: #{tpu_custom_call.1} parent=51 // pred_check
          %p352 = pneg %p112
        $region66: #{tpu_custom_call.1} parent=51 // pred_check_branch
          %354 = sbr.rel (%p352) target = $region68
        $region67: #{tpu_custom_call.1} parent=51 // pred_region
          %355 = dma.done [#allocation10], 2048
        $region68: #{tpu_custom_call.1} parent=51 // pred_fallthru
          _
        // Predicated region
        $region69: #{tpu_custom_call.1} parent=51 // pred_check
          %p356 = pneg %p133
        $region70: #{tpu_custom_call.1} parent=51 // pred_check_branch
          %358 = sbr.rel (%p356) target = $region72
        $region71: #{tpu_custom_call.1} parent=51 // pred_region
          %359 = dma.done [#allocation10], 2048
        $region72: #{tpu_custom_call.1} parent=51 // pred_fallthru
          _
        // Predicated region
        $region73: #{tpu_custom_call.1} parent=51 // pred_check
          %p360 = pneg %p154
        $region74: #{tpu_custom_call.1} parent=51 // pred_check_branch
          %362 = sbr.rel (%p360) target = $region76
        $region75: #{tpu_custom_call.1} parent=51 // pred_region
          %363 = dma.done [#allocation13], 2048
        $region76: #{tpu_custom_call.1} parent=51 // pred_fallthru
          _
        %s364 = sand.u32 %s36, 1
        %s365 = scalar_lea.sflag [#allocation4], %s364
        %s366 = sand.u32 %s36, 1
        %s367 = smul.addr %s366, 8
        %s368 = scalar_lea.vmem [#allocation3], %s367
        %p369 = pneg %p49
        %p370 = pneg %p46
        %p371 = pneg %p70
        %p372 = pneg %p67
        %p373 = pneg %p91
        %p374 = pneg %p88
        %p375 = pneg %p112
        %p376 = pneg %p109
        %p377 = pneg %p133
        %p378 = pneg %p130
        %p379 = pneg %p154
        %p380 = pneg %p151
        %p381 = pneg %p175
        %p382 = pneg %p172
        %p383 = pneg %p196
        %p384 = pneg %p193
        %p385 = pneg %p222
        %p386 = pneg %p219
        %s387 = sand.u32 %s209, 1
        %s388 = scalar_lea.sflag [#allocation5], %s387
        %s389 = sand.u32 %s209, 1
        %s390 = smul.addr %s389, 8
        %s391 = scalar_lea.vmem [#allocation14], %s390
        %p392 = scmp.eq.s32.totalorder %s28, 0
        // Predicated region
        $region77: #{tpu_custom_call.1} parent=51 // pred_check
          %p393 = pneg %p392
        $region78: #{tpu_custom_call.1} parent=51 // pred_check_branch
          %395 = sbr.rel (%p393) target = $region80
        $region79: #{tpu_custom_call.1} parent=51 // pred_region
          %v396 = vld [vmem:[#allocation6] sm:$0xff]
          %vm397 = vcmask 261120
          %398 = vst.msk [vmem:[#allocation2] sm:$0xff] %vm397, %v396
        $region80: #{tpu_custom_call.1} parent=51 // pred_fallthru
          _
        %v399 = vld [vmem:[%s339] sm:$0xff]
        %v400 = vld [vmem:[#allocation2] sm:$0xff]
        %402 = vrot.lane.b32.xlu0 %v400, 32
        %v403 = vpop.permute.xlu0 %402
        %vm405 = vcmask 261120
        %v406 = vsel %vm405, %v399, %v403
        %v407 = vld [vmem:[#allocation8] sm:$0xff]
        %v408 = vld [vmem:[#allocation8 + $0x8] sm:$0xff]
        %v409 = vld [vmem:[#allocation8 + $0x10] sm:$0xff]
        %v410 = vld [vmem:[#allocation8 + $0x18] sm:$0xff]
        %v411 = vld [vmem:[#allocation8 + $0x20] sm:$0xff]
        %v412 = vld [vmem:[#allocation8 + $0x28] sm:$0xff]
        %v413 = vld [vmem:[#allocation8 + $0x30] sm:$0xff]
        %v414 = vld [vmem:[#allocation8 + $0x38] sm:$0xff]
        %vm415 = vcmask 523264
        %v417 = vsel %vm415, %v406, 0
        %419 = vmatprep.subr.mxu0 0.0
        %420 = vmatpush1.msra.mxu0 0.0
        %421 = vmatprep.subr.mxu0 0.0
        %422 = vmatpush1.msra.mxu0 0.0
        %423 = vmatprep.subr.mxu0 0.0
        %424 = vmatpush1.msra.mxu0 0.0
        %425 = vmatprep.subr.mxu0 0.0
        %426 = vmatpush1.msra.mxu0 0.0
        %427 = vmatprep.subr.mxu0 0.0
        %428 = vmatpush1.msra.mxu0 0.0
        %429 = vmatprep.subr.mxu0 0.0
        %430 = vmatpush1.msra.mxu0 0.0
        %431 = vmatprep.subr.mxu0 0.0
        %432 = vmatpush1.msra.mxu0 0.0
        %433 = vmatprep.subr.mxu0 0.0
        %434 = vmatpush1.msra.mxu0 0.0
        %435 = vmatprep.subr.mxu0 0.0
        %436 = vmatpush1.msra.mxu0 %v414
        %437 = vmatprep.subr.mxu0 0.0
        %438 = vmatpush1.msra.mxu0 %v413
        %439 = vmatprep.subr.mxu0 0.0
        %440 = vmatpush1.msra.mxu0 %v412
        %441 = vmatprep.subr.mxu0 0.0
        %442 = vmatpush1.msra.mxu0 %v411
        %443 = vmatprep.subr.mxu0 0.0
        %444 = vmatpush1.msra.mxu0 %v410
        %445 = vmatprep.subr.mxu0 0.0
        %446 = vmatpush1.msra.mxu0 %v409
        %447 = vmatprep.subr.mxu0 0.0
        %448 = vmatpush1.msra.mxu0 %v408
        %449 = vmatprep.subr.mxu0 0.0
        %450 = vmatpush1.msra.mxu0 %v407
        %451 = vmatprep.subr.mxu0 0.0
        %452 = vmatpush2.msra.mxu0 0.0
        %453 = vmatprep.subr.mxu0 0.0
        %454 = vmatpush2.msra.mxu0 0.0
        %455 = vmatprep.subr.mxu0 0.0
        %456 = vmatpush2.msra.mxu0 0.0
        %457 = vmatprep.subr.mxu0 0.0
        %458 = vmatpush2.msra.mxu0 0.0
        %459 = vmatprep.subr.mxu0 0.0
        %460 = vmatpush2.msra.mxu0 0.0
        %461 = vmatprep.subr.mxu0 0.0
        %462 = vmatpush2.msra.mxu0 0.0
        %463 = vmatprep.subr.mxu0 0.0
        %464 = vmatpush2.msra.mxu0 0.0
        %465 = vmatprep.subr.mxu0 0.0
        %466 = vmatpush2.msra.mxu0 0.0
        %467 = vmatprep.subr.mxu0 0.0
        %468 = vmatpush2.msra.mxu0 0.0
        %469 = vmatprep.subr.mxu0 0.0
        %470 = vmatpush2.msra.mxu0 0.0
        %471 = vmatprep.subr.mxu0 0.0
        %472 = vmatpush2.msra.mxu0 0.0
        %473 = vmatprep.subr.mxu0 0.0
        %474 = vmatpush2.msra.mxu0 0.0
        %475 = vmatprep.subr.mxu0 0.0
        %476 = vmatpush2.msra.mxu0 0.0
        %477 = vmatprep.subr.mxu0 0.0
        %478 = vmatpush2.msra.mxu0 0.0
        %479 = vmatprep.subr.mxu0 0.0
        %480 = vmatpush2.msra.mxu0 0.0
        %481 = vmatprep.subr.mxu0 0.0
        %482 = vmatpush2.msra.mxu0 0.0
        %483 = vmatprep.mubr.f32.mxu0 0.0
        %484 = vmatmul.mubr.f32.gmra.mxu0 %v417
        %v485 = vpop.f32.mrf.mxu0
        %v486 = vadd.f32 0.0, %v485
        %v487 = vpop.f32.mrf.mxu0
        %488 = vdwg.mxu0
        %v489 = vld [vmem:[#allocation9] sm:$0xff]
        %v490 = vld [vmem:[#allocation9 + $0x8] sm:$0xff]
        %v491 = vld [vmem:[#allocation9 + $0x10] sm:$0xff]
        %v492 = vld [vmem:[#allocation9 + $0x18] sm:$0xff]
        %v493 = vld [vmem:[#allocation9 + $0x20] sm:$0xff]
        %v494 = vld [vmem:[#allocation9 + $0x28] sm:$0xff]
        %v495 = vld [vmem:[#allocation9 + $0x30] sm:$0xff]
        %v496 = vld [vmem:[#allocation9 + $0x38] sm:$0xff]
        %v497 = vld [vmem:[#allocation9 + $0x40] sm:$0xff]
        %v498 = vld [vmem:[#allocation9 + $0x48] sm:$0xff]
        %v499 = vld [vmem:[#allocation9 + $0x50] sm:$0xff]
        %v500 = vld [vmem:[#allocation9 + $0x58] sm:$0xff]
        %v501 = vld [vmem:[#allocation9 + $0x60] sm:$0xff]
        %v502 = vld [vmem:[#allocation9 + $0x68] sm:$0xff]
        %v503 = vld [vmem:[#allocation9 + $0x70] sm:$0xff]
        %v504 = vld [vmem:[#allocation9 + $0x78] sm:$0xff]
        %v505 = vld [vmem:[%s6] sm:$0x1]
        %v506 = vld [vmem:[%s7] sm:$0x1]
        %507 = vmatprep.subr.mxu0 0.0
        %508 = vmatpush1.msra.mxu0 %v504
        %509 = vmatprep.subr.mxu0 0.0
        %510 = vmatpush1.msra.mxu0 %v503
        %511 = vmatprep.subr.mxu0 0.0
        %512 = vmatpush1.msra.mxu0 %v502
        %513 = vmatprep.subr.mxu0 0.0
        %514 = vmatpush1.msra.mxu0 %v501
        %515 = vmatprep.subr.mxu0 0.0
        %516 = vmatpush1.msra.mxu0 %v500
        %517 = vmatprep.subr.mxu0 0.0
        %518 = vmatpush1.msra.mxu0 %v499
        %519 = vmatprep.subr.mxu0 0.0
        %520 = vmatpush1.msra.mxu0 %v498
        %521 = vmatprep.subr.mxu0 0.0
        %522 = vmatpush1.msra.mxu0 %v497
        %523 = vmatprep.subr.mxu0 0.0
        %524 = vmatpush1.msra.mxu0 %v496
        %525 = vmatprep.subr.mxu0 0.0
        %526 = vmatpush1.msra.mxu0 %v495
        %527 = vmatprep.subr.mxu0 0.0
        %528 = vmatpush1.msra.mxu0 %v494
        %529 = vmatprep.subr.mxu0 0.0
        %530 = vmatpush1.msra.mxu0 %v493
        %531 = vmatprep.subr.mxu0 0.0
        %532 = vmatpush1.msra.mxu0 %v492
        %533 = vmatprep.subr.mxu0 0.0
        %534 = vmatpush1.msra.mxu0 %v491
        %535 = vmatprep.subr.mxu0 0.0
        %536 = vmatpush1.msra.mxu0 %v490
        %537 = vmatprep.subr.mxu0 0.0
        %538 = vmatpush1.msra.mxu0 %v489
        %539 = vmatprep.subr.mxu0 0.0
        %540 = vmatpush2.msra.mxu0 0.0
        %541 = vmatprep.subr.mxu0 0.0
        %542 = vmatpush2.msra.mxu0 0.0
        %543 = vmatprep.subr.mxu0 0.0
        %544 = vmatpush2.msra.mxu0 0.0
        %545 = vmatprep.subr.mxu0 0.0
        %546 = vmatpush2.msra.mxu0 0.0
        %547 = vmatprep.subr.mxu0 0.0
        %548 = vmatpush2.msra.mxu0 0.0
        %549 = vmatprep.subr.mxu0 0.0
        %550 = vmatpush2.msra.mxu0 0.0
        %551 = vmatprep.subr.mxu0 0.0
        %552 = vmatpush2.msra.mxu0 0.0
        %553 = vmatprep.subr.mxu0 0.0
        %554 = vmatpush2.msra.mxu0 0.0
        %555 = vmatprep.subr.mxu0 0.0
        %556 = vmatpush2.msra.mxu0 0.0
        %557 = vmatprep.subr.mxu0 0.0
        %558 = vmatpush2.msra.mxu0 0.0
        %559 = vmatprep.subr.mxu0 0.0
        %560 = vmatpush2.msra.mxu0 0.0
        %561 = vmatprep.subr.mxu0 0.0
        %562 = vmatpush2.msra.mxu0 0.0
        %563 = vmatprep.subr.mxu0 0.0
        %564 = vmatpush2.msra.mxu0 0.0
        %565 = vmatprep.subr.mxu0 0.0
        %566 = vmatpush2.msra.mxu0 0.0
        %567 = vmatprep.subr.mxu0 0.0
        %568 = vmatpush2.msra.mxu0 0.0
        %569 = vmatprep.subr.mxu0 0.0
        %570 = vmatpush2.msra.mxu0 0.0
        %571 = vmatprep.mubr.f32.mxu0 0.0
        %572 = vmatmul.mubr.f32.gmra.mxu0 %v486
        %v573 = vpop.f32.mrf.mxu0
        %v574 = vadd.f32 0.0, %v573
        %v575 = vpop.f32.mrf.mxu0
        %576 = vdwg.mxu0
        %v577 = vsub.f32 %v486, %v574
        %v578 = vmul.f32 %v577, %v577
        %579 = vmatprep.subr.mxu0 0.0
        %580 = vmatpush1.msra.mxu0 %v504
        %581 = vmatprep.subr.mxu0 0.0
        %582 = vmatpush1.msra.mxu0 %v503
        %583 = vmatprep.subr.mxu0 0.0
        %584 = vmatpush1.msra.mxu0 %v502
        %585 = vmatprep.subr.mxu0 0.0
        %586 = vmatpush1.msra.mxu0 %v501
        %587 = vmatprep.subr.mxu0 0.0
        %588 = vmatpush1.msra.mxu0 %v500
        %589 = vmatprep.subr.mxu0 0.0
        %590 = vmatpush1.msra.mxu0 %v499
        %591 = vmatprep.subr.mxu0 0.0
        %592 = vmatpush1.msra.mxu0 %v498
        %593 = vmatprep.subr.mxu0 0.0
        %594 = vmatpush1.msra.mxu0 %v497
        %595 = vmatprep.subr.mxu0 0.0
        %596 = vmatpush1.msra.mxu0 %v496
        %597 = vmatprep.subr.mxu0 0.0
        %598 = vmatpush1.msra.mxu0 %v495
        %599 = vmatprep.subr.mxu0 0.0
        %600 = vmatpush1.msra.mxu0 %v494
        %601 = vmatprep.subr.mxu0 0.0
        %602 = vmatpush1.msra.mxu0 %v493
        %603 = vmatprep.subr.mxu0 0.0
        %604 = vmatpush1.msra.mxu0 %v492
        %605 = vmatprep.subr.mxu0 0.0
        %606 = vmatpush1.msra.mxu0 %v491
        %607 = vmatprep.subr.mxu0 0.0
        %608 = vmatpush1.msra.mxu0 %v490
        %609 = vmatprep.subr.mxu0 0.0
        %610 = vmatpush1.msra.mxu0 %v489
        %611 = vmatprep.subr.mxu0 0.0
        %612 = vmatpush2.msra.mxu0 0.0
        %613 = vmatprep.subr.mxu0 0.0
        %614 = vmatpush2.msra.mxu0 0.0
        %615 = vmatprep.subr.mxu0 0.0
        %616 = vmatpush2.msra.mxu0 0.0
        %617 = vmatprep.subr.mxu0 0.0
        %618 = vmatpush2.msra.mxu0 0.0
        %619 = vmatprep.subr.mxu0 0.0
        %620 = vmatpush2.msra.mxu0 0.0
        %621 = vmatprep.subr.mxu0 0.0
        %622 = vmatpush2.msra.mxu0 0.0
        %623 = vmatprep.subr.mxu0 0.0
        %624 = vmatpush2.msra.mxu0 0.0
        %625 = vmatprep.subr.mxu0 0.0
        %626 = vmatpush2.msra.mxu0 0.0
        %627 = vmatprep.subr.mxu0 0.0
        %628 = vmatpush2.msra.mxu0 0.0
        %629 = vmatprep.subr.mxu0 0.0
        %630 = vmatpush2.msra.mxu0 0.0
        %631 = vmatprep.subr.mxu0 0.0
        %632 = vmatpush2.msra.mxu0 0.0
        %633 = vmatprep.subr.mxu0 0.0
        %634 = vmatpush2.msra.mxu0 0.0
        %635 = vmatprep.subr.mxu0 0.0
        %636 = vmatpush2.msra.mxu0 0.0
        %637 = vmatprep.subr.mxu0 0.0
        %638 = vmatpush2.msra.mxu0 0.0
        %639 = vmatprep.subr.mxu0 0.0
        %640 = vmatpush2.msra.mxu0 0.0
        %641 = vmatprep.subr.mxu0 0.0
        %642 = vmatpush2.msra.mxu0 0.0
        %643 = vmatprep.mubr.f32.mxu0 0.0
        %644 = vmatmul.mubr.f32.gmra.mxu0 %v578
        %v645 = vpop.f32.mrf.mxu0
        %v646 = vadd.f32 0.001, %v645
        %v647 = vpop.f32.mrf.mxu0
        %648 = vdwg.mxu0
        %v649 = vrsqrt.pop %v646
        %v650 = vmul.f32 %v577, %v649
        %v652 = vlaneseq
        %v653 = vshrl.u32 %v652, 7
        %v654 = vsub.s32 0, %v653
        %v655 = vrot.slane %v505, %v654
        %v657 = vmul.f32 %v650, %v655
        %v659 = vlaneseq
        %v660 = vshrl.u32 %v659, 7
        %v661 = vsub.s32 0, %v660
        %v662 = vrot.slane %v506, %v661
        %v664 = vadd.f32 %v657, %v662
        %v665 = vxor.u32 %v664, 2147483648
        %v666 = vmul.f32 %v665, 1.442695
        %v667 = vpow.pop %v666
        %v668 = vadd.f32 %v667, 1.0
        %v669 = vrcp.pop %v668
        %v670 = vmul.f32 1.0, %v669
        %v671 = vld [vmem:[#allocation12] sm:$0xff]
        %v672 = vld [vmem:[#allocation12 + $0x8] sm:$0xff]
        %v673 = vld [vmem:[#allocation12 + $0x10] sm:$0xff]
        %v674 = vld [vmem:[#allocation12 + $0x18] sm:$0xff]
        %v675 = vld [vmem:[#allocation12 + $0x20] sm:$0xff]
        %v676 = vld [vmem:[#allocation12 + $0x28] sm:$0xff]
        %v677 = vld [vmem:[#allocation12 + $0x30] sm:$0xff]
        %v678 = vld [vmem:[#allocation12 + $0x38] sm:$0xff]
        %v679 = vld [vmem:[#allocation12 + $0x40] sm:$0xff]
        %v680 = vld [vmem:[#allocation12 + $0x48] sm:$0xff]
        %v681 = vld [vmem:[#allocation12 + $0x50] sm:$0xff]
        %v682 = vld [vmem:[#allocation12 + $0x58] sm:$0xff]
        %v683 = vld [vmem:[#allocation12 + $0x60] sm:$0xff]
        %v684 = vld [vmem:[#allocation12 + $0x68] sm:$0xff]
        %v685 = vld [vmem:[#allocation12 + $0x70] sm:$0xff]
        %v686 = vld [vmem:[#allocation12 + $0x78] sm:$0xff]
        %v687 = vld [vmem:[#allocation11] sm:$0xff]
        %v688 = vld [vmem:[#allocation11 + $0x8] sm:$0xff]
        %v689 = vld [vmem:[#allocation11 + $0x10] sm:$0xff]
        %v690 = vld [vmem:[#allocation11 + $0x18] sm:$0xff]
        %v691 = vld [vmem:[#allocation11 + $0x20] sm:$0xff]
        %v692 = vld [vmem:[#allocation11 + $0x28] sm:$0xff]
        %v693 = vld [vmem:[#allocation11 + $0x30] sm:$0xff]
        %v694 = vld [vmem:[#allocation11 + $0x38] sm:$0xff]
        %v695 = vld [vmem:[#allocation11 + $0x40] sm:$0xff]
        %v696 = vld [vmem:[#allocation11 + $0x48] sm:$0xff]
        %v697 = vld [vmem:[#allocation11 + $0x50] sm:$0xff]
        %v698 = vld [vmem:[#allocation11 + $0x58] sm:$0xff]
        %v699 = vld [vmem:[#allocation11 + $0x60] sm:$0xff]
        %v700 = vld [vmem:[#allocation11 + $0x68] sm:$0xff]
        %v701 = vld [vmem:[#allocation11 + $0x70] sm:$0xff]
        %v702 = vld [vmem:[#allocation11 + $0x78] sm:$0xff]
        %703 = vmatprep.subr.mxu0 0.0
        %704 = vmatpush1.msra.mxu0 %v702
        %705 = vmatprep.subr.mxu0 0.0
        %706 = vmatpush1.msra.mxu0 %v701
        %707 = vmatprep.subr.mxu0 0.0
        %708 = vmatpush1.msra.mxu0 %v700
        %709 = vmatprep.subr.mxu0 0.0
        %710 = vmatpush1.msra.mxu0 %v699
        %711 = vmatprep.subr.mxu0 0.0
        %712 = vmatpush1.msra.mxu0 %v698
        %713 = vmatprep.subr.mxu0 0.0
        %714 = vmatpush1.msra.mxu0 %v697
        %715 = vmatprep.subr.mxu0 0.0
        %716 = vmatpush1.msra.mxu0 %v696
        %717 = vmatprep.subr.mxu0 0.0
        %718 = vmatpush1.msra.mxu0 %v695
        %719 = vmatprep.subr.mxu0 0.0
        %720 = vmatpush1.msra.mxu0 %v694
        %721 = vmatprep.subr.mxu0 0.0
        %722 = vmatpush1.msra.mxu0 %v693
        %723 = vmatprep.subr.mxu0 0.0
        %724 = vmatpush1.msra.mxu0 %v692
        %725 = vmatprep.subr.mxu0 0.0
        %726 = vmatpush1.msra.mxu0 %v691
        %727 = vmatprep.subr.mxu0 0.0
        %728 = vmatpush1.msra.mxu0 %v690
        %729 = vmatprep.subr.mxu0 0.0
        %730 = vmatpush1.msra.mxu0 %v689
        %731 = vmatprep.subr.mxu0 0.0
        %732 = vmatpush1.msra.mxu0 %v688
        %733 = vmatprep.subr.mxu0 0.0
        %734 = vmatpush1.msra.mxu0 %v687
        %735 = vmatprep.subr.mxu0 0.0
        %736 = vmatpush2.msra.mxu0 0.0
        %737 = vmatprep.subr.mxu0 0.0
        %738 = vmatpush2.msra.mxu0 0.0
        %739 = vmatprep.subr.mxu0 0.0
        %740 = vmatpush2.msra.mxu0 0.0
        %741 = vmatprep.subr.mxu0 0.0
        %742 = vmatpush2.msra.mxu0 0.0
        %743 = vmatprep.subr.mxu0 0.0
        %744 = vmatpush2.msra.mxu0 0.0
        %745 = vmatprep.subr.mxu0 0.0
        %746 = vmatpush2.msra.mxu0 0.0
        %747 = vmatprep.subr.mxu0 0.0
        %748 = vmatpush2.msra.mxu0 0.0
        %749 = vmatprep.subr.mxu0 0.0
        %750 = vmatpush2.msra.mxu0 0.0
        %751 = vmatprep.subr.mxu0 0.0
        %752 = vmatpush2.msra.mxu0 0.0
        %753 = vmatprep.subr.mxu0 0.0
        %754 = vmatpush2.msra.mxu0 0.0
        %755 = vmatprep.subr.mxu0 0.0
        %756 = vmatpush2.msra.mxu0 0.0
        %757 = vmatprep.subr.mxu0 0.0
        %758 = vmatpush2.msra.mxu0 0.0
        %759 = vmatprep.subr.mxu0 0.0
        %760 = vmatpush2.msra.mxu0 0.0
        %761 = vmatprep.subr.mxu0 0.0
        %762 = vmatpush2.msra.mxu0 0.0
        %763 = vmatprep.subr.mxu0 0.0
        %764 = vmatpush2.msra.mxu0 0.0
        %765 = vmatprep.subr.mxu0 0.0
        %766 = vmatpush2.msra.mxu0 0.0
        %767 = vmatprep.mubr.f32.mxu0 0.0
        %768 = vmatmul.mubr.f32.gmra.mxu0 %v670
        %v769 = vpop.f32.mrf.mxu0
        %v770 = vadd.f32 0.0, %v769
        %v771 = vpop.f32.mrf.mxu0
        %772 = vdwg.mxu0
        %v773 = vmul.f32 %v770, %v486
        %774 = vmatprep.subr.mxu0 0.0
        %775 = vmatpush1.msra.mxu0 %v686
        %776 = vmatprep.subr.mxu0 0.0
        %777 = vmatpush1.msra.mxu0 %v685
        %778 = vmatprep.subr.mxu0 0.0
        %779 = vmatpush1.msra.mxu0 %v684
        %780 = vmatprep.subr.mxu0 0.0
        %781 = vmatpush1.msra.mxu0 %v683
        %782 = vmatprep.subr.mxu0 0.0
        %783 = vmatpush1.msra.mxu0 %v682
        %784 = vmatprep.subr.mxu0 0.0
        %785 = vmatpush1.msra.mxu0 %v681
        %786 = vmatprep.subr.mxu0 0.0
        %787 = vmatpush1.msra.mxu0 %v680
        %788 = vmatprep.subr.mxu0 0.0
        %789 = vmatpush1.msra.mxu0 %v679
        %790 = vmatprep.subr.mxu0 0.0
        %791 = vmatpush1.msra.mxu0 %v678
        %792 = vmatprep.subr.mxu0 0.0
        %793 = vmatpush1.msra.mxu0 %v677
        %794 = vmatprep.subr.mxu0 0.0
        %795 = vmatpush1.msra.mxu0 %v676
        %796 = vmatprep.subr.mxu0 0.0
        %797 = vmatpush1.msra.mxu0 %v675
        %798 = vmatprep.subr.mxu0 0.0
        %799 = vmatpush1.msra.mxu0 %v674
        %800 = vmatprep.subr.mxu0 0.0
        %801 = vmatpush1.msra.mxu0 %v673
        %802 = vmatprep.subr.mxu0 0.0
        %803 = vmatpush1.msra.mxu0 %v672
        %804 = vmatprep.subr.mxu0 0.0
        %805 = vmatpush1.msra.mxu0 %v671
        %806 = vmatprep.subr.mxu0 0.0
        %807 = vmatpush2.msra.mxu0 0.0
        %808 = vmatprep.subr.mxu0 0.0
        %809 = vmatpush2.msra.mxu0 0.0
        %810 = vmatprep.subr.mxu0 0.0
        %811 = vmatpush2.msra.mxu0 0.0
        %812 = vmatprep.subr.mxu0 0.0
        %813 = vmatpush2.msra.mxu0 0.0
        %814 = vmatprep.subr.mxu0 0.0
        %815 = vmatpush2.msra.mxu0 0.0
        %816 = vmatprep.subr.mxu0 0.0
        %817 = vmatpush2.msra.mxu0 0.0
        %818 = vmatprep.subr.mxu0 0.0
        %819 = vmatpush2.msra.mxu0 0.0
        %820 = vmatprep.subr.mxu0 0.0
        %821 = vmatpush2.msra.mxu0 0.0
        %822 = vmatprep.subr.mxu0 0.0
        %823 = vmatpush2.msra.mxu0 0.0
        %824 = vmatprep.subr.mxu0 0.0
        %825 = vmatpush2.msra.mxu0 0.0
        %826 = vmatprep.subr.mxu0 0.0
        %827 = vmatpush2.msra.mxu0 0.0
        %828 = vmatprep.subr.mxu0 0.0
        %829 = vmatpush2.msra.mxu0 0.0
        %830 = vmatprep.subr.mxu0 0.0
        %831 = vmatpush2.msra.mxu0 0.0
        %832 = vmatprep.subr.mxu0 0.0
        %833 = vmatpush2.msra.mxu0 0.0
        %834 = vmatprep.subr.mxu0 0.0
        %835 = vmatpush2.msra.mxu0 0.0
        %836 = vmatprep.subr.mxu0 0.0
        %837 = vmatpush2.msra.mxu0 0.0
        %838 = vmatprep.mubr.f32.mxu0 0.0
        %839 = vmatmul.mubr.f32.gmra.mxu0 %v486
        %v840 = vpop.f32.mrf.mxu0
        %v841 = vadd.f32 %v773, %v840
        %v842 = vpop.f32.mrf.mxu0
        %843 = vdwg.mxu0
        %844 = vmatprep.subr.mxu0 0.0
        %845 = vmatpush1.msra.mxu0 %v504
        %846 = vmatprep.subr.mxu0 0.0
        %847 = vmatpush1.msra.mxu0 %v503
        %848 = vmatprep.subr.mxu0 0.0
        %849 = vmatpush1.msra.mxu0 %v502
        %850 = vmatprep.subr.mxu0 0.0
        %851 = vmatpush1.msra.mxu0 %v501
        %852 = vmatprep.subr.mxu0 0.0
        %853 = vmatpush1.msra.mxu0 %v500
        %854 = vmatprep.subr.mxu0 0.0
        %855 = vmatpush1.msra.mxu0 %v499
        %856 = vmatprep.subr.mxu0 0.0
        %857 = vmatpush1.msra.mxu0 %v498
        %858 = vmatprep.subr.mxu0 0.0
        %859 = vmatpush1.msra.mxu0 %v497
        %860 = vmatprep.subr.mxu0 0.0
        %861 = vmatpush1.msra.mxu0 %v496
        %862 = vmatprep.subr.mxu0 0.0
        %863 = vmatpush1.msra.mxu0 %v495
        %864 = vmatprep.subr.mxu0 0.0
        %865 = vmatpush1.msra.mxu0 %v494
        %866 = vmatprep.subr.mxu0 0.0
        %867 = vmatpush1.msra.mxu0 %v493
        %868 = vmatprep.subr.mxu0 0.0
        %869 = vmatpush1.msra.mxu0 %v492
        %870 = vmatprep.subr.mxu0 0.0
        %871 = vmatpush1.msra.mxu0 %v491
        %872 = vmatprep.subr.mxu0 0.0
        %873 = vmatpush1.msra.mxu0 %v490
        %874 = vmatprep.subr.mxu0 0.0
        %875 = vmatpush1.msra.mxu0 %v489
        %876 = vmatprep.subr.mxu0 0.0
        %877 = vmatpush2.msra.mxu0 0.0
        %878 = vmatprep.subr.mxu0 0.0
        %879 = vmatpush2.msra.mxu0 0.0
        %880 = vmatprep.subr.mxu0 0.0
        %881 = vmatpush2.msra.mxu0 0.0
        %882 = vmatprep.subr.mxu0 0.0
        %883 = vmatpush2.msra.mxu0 0.0
        %884 = vmatprep.subr.mxu0 0.0
        %885 = vmatpush2.msra.mxu0 0.0
        %886 = vmatprep.subr.mxu0 0.0
        %887 = vmatpush2.msra.mxu0 0.0
        %888 = vmatprep.subr.mxu0 0.0
        %889 = vmatpush2.msra.mxu0 0.0
        %890 = vmatprep.subr.mxu0 0.0
        %891 = vmatpush2.msra.mxu0 0.0
        %892 = vmatprep.subr.mxu0 0.0
        %893 = vmatpush2.msra.mxu0 0.0
        %894 = vmatprep.subr.mxu0 0.0
        %895 = vmatpush2.msra.mxu0 0.0
        %896 = vmatprep.subr.mxu0 0.0
        %897 = vmatpush2.msra.mxu0 0.0
        %898 = vmatprep.subr.mxu0 0.0
        %899 = vmatpush2.msra.mxu0 0.0
        %900 = vmatprep.subr.mxu0 0.0
        %901 = vmatpush2.msra.mxu0 0.0
        %902 = vmatprep.subr.mxu0 0.0
        %903 = vmatpush2.msra.mxu0 0.0
        %904 = vmatprep.subr.mxu0 0.0
        %905 = vmatpush2.msra.mxu0 0.0
        %906 = vmatprep.subr.mxu0 0.0
        %907 = vmatpush2.msra.mxu0 0.0
        %908 = vmatprep.mubr.f32.mxu0 0.0
        %909 = vmatmul.mubr.f32.gmra.mxu0 %v841
        %v910 = vpop.f32.mrf.mxu0
        %v911 = vadd.f32 0.0, %v910
        %v912 = vpop.f32.mrf.mxu0
        %913 = vdwg.mxu0
        %v914 = vsub.f32 %v841, %v911
        %v915 = vmul.f32 %v914, %v914
        %916 = vmatprep.subr.mxu0 0.0
        %917 = vmatpush1.msra.mxu0 %v504
        %918 = vmatprep.subr.mxu0 0.0
        %919 = vmatpush1.msra.mxu0 %v503
        %920 = vmatprep.subr.mxu0 0.0
        %921 = vmatpush1.msra.mxu0 %v502
        %922 = vmatprep.subr.mxu0 0.0
        %923 = vmatpush1.msra.mxu0 %v501
        %924 = vmatprep.subr.mxu0 0.0
        %925 = vmatpush1.msra.mxu0 %v500
        %926 = vmatprep.subr.mxu0 0.0
        %927 = vmatpush1.msra.mxu0 %v499
        %928 = vmatprep.subr.mxu0 0.0
        %929 = vmatpush1.msra.mxu0 %v498
        %930 = vmatprep.subr.mxu0 0.0
        %931 = vmatpush1.msra.mxu0 %v497
        %932 = vmatprep.subr.mxu0 0.0
        %933 = vmatpush1.msra.mxu0 %v496
        %934 = vmatprep.subr.mxu0 0.0
        %935 = vmatpush1.msra.mxu0 %v495
        %936 = vmatprep.subr.mxu0 0.0
        %937 = vmatpush1.msra.mxu0 %v494
        %938 = vmatprep.subr.mxu0 0.0
        %939 = vmatpush1.msra.mxu0 %v493
        %940 = vmatprep.subr.mxu0 0.0
        %941 = vmatpush1.msra.mxu0 %v492
        %942 = vmatprep.subr.mxu0 0.0
        %943 = vmatpush1.msra.mxu0 %v491
        %944 = vmatprep.subr.mxu0 0.0
        %945 = vmatpush1.msra.mxu0 %v490
        %946 = vmatprep.subr.mxu0 0.0
        %947 = vmatpush1.msra.mxu0 %v489
        %948 = vmatprep.subr.mxu0 0.0
        %949 = vmatpush2.msra.mxu0 0.0
        %950 = vmatprep.subr.mxu0 0.0
        %951 = vmatpush2.msra.mxu0 0.0
        %952 = vmatprep.subr.mxu0 0.0
        %953 = vmatpush2.msra.mxu0 0.0
        %954 = vmatprep.subr.mxu0 0.0
        %955 = vmatpush2.msra.mxu0 0.0
        %956 = vmatprep.subr.mxu0 0.0
        %957 = vmatpush2.msra.mxu0 0.0
        %958 = vmatprep.subr.mxu0 0.0
        %959 = vmatpush2.msra.mxu0 0.0
        %960 = vmatprep.subr.mxu0 0.0
        %961 = vmatpush2.msra.mxu0 0.0
        %962 = vmatprep.subr.mxu0 0.0
        %963 = vmatpush2.msra.mxu0 0.0
        %964 = vmatprep.subr.mxu0 0.0
        %965 = vmatpush2.msra.mxu0 0.0
        %966 = vmatprep.subr.mxu0 0.0
        %967 = vmatpush2.msra.mxu0 0.0
        %968 = vmatprep.subr.mxu0 0.0
        %969 = vmatpush2.msra.mxu0 0.0
        %970 = vmatprep.subr.mxu0 0.0
        %971 = vmatpush2.msra.mxu0 0.0
        %972 = vmatprep.subr.mxu0 0.0
        %973 = vmatpush2.msra.mxu0 0.0
        %974 = vmatprep.subr.mxu0 0.0
        %975 = vmatpush2.msra.mxu0 0.0
        %976 = vmatprep.subr.mxu0 0.0
        %977 = vmatpush2.msra.mxu0 0.0
        %978 = vmatprep.subr.mxu0 0.0
        %979 = vmatpush2.msra.mxu0 0.0
        %980 = vmatprep.mubr.f32.mxu0 0.0
        %981 = vmatmul.mubr.f32.gmra.mxu0 %v915
        %v982 = vpop.f32.mrf.mxu0
        %v983 = vadd.f32 0.001, %v982
        %v984 = vpop.f32.mrf.mxu0
        %985 = vdwg.mxu0
        %v986 = vrsqrt.pop %v983
        %v987 = vmul.f32 %v914, %v986
        %v988 = vmul.f32 %v987, %v655
        %v989 = vadd.f32 %v988, %v662
        %v990 = vtanh.pop %v989
        %992 = vrot.lane.b32.xlu0 %v990, 64
        %v993 = vpop.permute.xlu0 %992
        %v995 = vmul.f32 %v670, %v993
        %v996 = vsub.f32 1.0, %v670
        %v997 = vmul.f32 %v996, %v403
        %v998 = vadd.f32 %v995, %v997
        %1000 = vrot.lane.b32.xlu0 %v998, 96
        %v1001 = vpop.permute.xlu0 %1000
        %1003 = vst.msk [vmem:[#allocation2] sm:$0xff] %vm405, %v1001
        %1004 = vst.msk [vmem:[%s391] sm:$0xff] %vm405, %v1001
        %s1005 = sand.u32 %s209, 1
        %s1006 = scalar_lea.sflag [#allocation5], %s1005
        %s1007 = sand.u32 %s209, 1
        %s1008 = smul.addr %s1007, 8
        %s1009 = scalar_lea.vmem [#allocation14], %s1008
        // Predicated region
        $region81: #{tpu_custom_call.1} parent=51 // pred_check
          %p1010 = pneg %p219
        $region82: #{tpu_custom_call.1} parent=51 // pred_check_branch
          %1012 = sbr.rel (%p1010) target = $region84
        $region83: #{tpu_custom_call.1} parent=51 // pred_region
          %s1014 = ssub.s32 128, 128
          %1015 = vsyncadd %s1006, %s1014
          %s1016 = smul.addr %s28, 128
          %s1017 = scalar_lea.hbm %s8, %s1016
          %s1019 = sshll.u32 %s1009, 4
          %s1020 = int_to_ptr.vmem [resolvable:$true] %s1019
          %1022 = dma.vmem_to_hbm [thread:$0]  %s1020, 128, %s1017, %s1006
        $region84: #{tpu_custom_call.1} parent=51 // pred_fallthru
          _
      $region52: #{tpu_custom_call.1} parent=5 // pred_fallthru
        _
      %p1023 = scmp.le.s32.totalorder 2, %s23
      // Predicated region
      $region85: #{tpu_custom_call.1} parent=5 // pred_check
        %p1024 = pneg %p1023
      $region86: #{tpu_custom_call.1} parent=5 // pred_check_branch
        %1026 = sbr.rel (%p1024) target = $region88
      $region87: #{tpu_custom_call.1} parent=5 // pred_region
        %s1027 = ssub.s32 %s23, 2
        // Predicated region
        $region89: #{tpu_custom_call.1} parent=87 // pred_check
          %p1028 = pneg %p225
        $region90: #{tpu_custom_call.1} parent=87 // pred_check_branch
          %1030 = sbr.rel (%p1028) target = $region92
        $region91: #{tpu_custom_call.1} parent=87 // pred_region
          %s1031 = sand.u32 %s210, 1
          %s1032 = scalar_lea.sflag [#allocation5], %s1031
          %s1033 = sand.u32 %s210, 1
          %s1034 = smul.addr %s1033, 8
          %s1035 = scalar_lea.vmem [#allocation14], %s1034
          %1036 = dma.done %s1032, 128
        $region92: #{tpu_custom_call.1} parent=87 // pred_fallthru
          _
      $region88: #{tpu_custom_call.1} parent=5 // pred_fallthru
        _
    $region6: #{tpu_custom_call.1} parent=1 // loop_footer
      %s27 = sadd.s32 1, %s23
    $region7: #{tpu_custom_call.1} parent=1 // loop_footer_branch
      %22 = sbr.rel target = $region3
    $region8: #{tpu_custom_call.1} parent=1 // loop_exit
      _
    %1037 = vsyncpa [#allocation4], 1
    %s1038 = scalar_lea.sflag [#allocation4], 1
    %1039 = vsyncpa %s1038, 1
    %1040 = vsyncpa [#allocation7], 1
    %1041 = vsyncpa [#allocation10], 1
    %1042 = vsyncpa [#allocation13], 1
    %1043 = vsyncpa [#allocation5], 1
    %s1044 = scalar_lea.sflag [#allocation5], 1
    %1045 = vsyncpa %s1044, 1

</llo_original>
